<compile_context>
chip_gen: v5e
topology: v5e:2x2
jax: 0.10.0
libtpu: 0.0.40
codegen_flags: <defaults>
</compile_context>

<pallas_src>
import functools

import jax
import jax.numpy as jnp
from jax.experimental import pallas as pl
from jax.experimental.pallas import tpu as pltpu

_MIB = 1024 * 1024


def _round_up(x, m):
    return ((x + m - 1) // m) * m


def _tpu_config():
    """Per-generation VMEM budgets (bytes) and TensorCore count.

    input_budget: total bytes across ALL pipeline buffers for (logits + target)
    tiles.  vmem_limit: scoped-VMEM limit handed to the compiler.  cores: how
    many TensorCores the parallel chunk axis can use.
    """
    kind = ""
    try:
        kind = jax.devices()[0].device_kind.lower()
    except Exception:
        pass
    if "v7" in kind or "7x" in kind:
        # 64 MiB VMEM/TC is the binding constraint; keep resident well under it.
        return dict(input_budget=32 * _MIB, vmem_limit=48 * _MIB, cores=2)
    if "v6" in kind:
        # 128 MiB physical VMEM; large tiles amortize the ~0.35us/step overhead.
        return dict(input_budget=64 * _MIB, vmem_limit=96 * _MIB, cores=1)
    if "v5p" in kind:
        return dict(input_budget=24 * _MIB, vmem_limit=32 * _MIB, cores=2)
    if "v4" in kind:
        return dict(input_budget=24 * _MIB, vmem_limit=32 * _MIB, cores=2)
    if "v5" in kind:  # v5e / v5 lite
        return dict(input_budget=48 * _MIB, vmem_limit=64 * _MIB, cores=1)
    # Unknown hardware: conservative (matches the previously validated config).
    return dict(input_budget=16 * _MIB, vmem_limit=32 * _MIB, cores=1)


def _pick_tiling(n, c, dtype, input_budget, num_buffers, tile_n=None):
    """Choose (tile_n, inner_rows).

    tile_n     -- rows per pipelined DMA block (big -> amortizes per-step cost).
    inner_rows -- rows per in-kernel compute chunk (small -> bounds the f32
                  temporaries independent of tile_n).
    """
    itemsize = jnp.dtype(dtype).itemsize
    c_lanes = max(128, _round_up(max(c, 1), 128))       # lane padding in VMEM
    # Resident VMEM per tile row, per pipeline buffer:
    #   logits: c_lanes * itemsize  (lane-padded block row)
    #   target: 128 * 4             ((tile_n, 1) int32 lane-pads to 128 lanes)
    row_bytes = c_lanes * itemsize + 128 * 4
    # Row granularity: 8 sublanes for 32-bit, 16 for 16-bit, 32 for 8-bit dtypes.
    row_mult = 8 * max(1, 4 // itemsize)

    # Compute-chunk rows: ~5 live (inner, c_lanes) f32 temporaries, keep ~1-2 MiB.
    inner_pref = min(512, (1 * _MIB) // (c_lanes * 4))
    inner_pref = max(row_mult, (inner_pref // row_mult) * row_mult)

    if tile_n is None:
        tile_n = (input_budget // max(1, num_buffers)) // row_bytes
        tile_n = max(row_mult, (tile_n // inner_pref) * inner_pref)

    if n < row_mult:
        return n, n                                       # block == full array dim

    tile_n = min(int(tile_n), _round_up(n, row_mult))
    tile_n = max(row_mult, (tile_n // row_mult) * row_mult)
    if tile_n % inner_pref == 0:
        inner = inner_pref
    else:
        inner = row_mult                                  # tile_n is a multiple of this
    return tile_n, inner


def _focal_loss_kernel(x_ref, t_ref, out_ref, acc_ref, *, gamma, n_total,
                       tile_n, inner_rows, tiles_per_chunk, needs_mask):
    ci = pl.program_id(0)            # parallel chunk axis (one chunk per TC)
    ti = pl.program_id(1)            # reduction axis: tiles within the chunk

    @pl.when(ti == 0)
    def _():
        acc_ref[...] = jnp.zeros_like(acc_ref)

    lin = ci * tiles_per_chunk + ti              # linear (unclamped) tile index
    n_inner = tile_n // inner_rows               # static

    def per_row_loss(x, tgt):
        # x: (inner_rows, C) f32 logits; tgt: (inner_rows, 1) int32 labels.
        # All reductions below are per-row, so garbage in padded / out-of-range
        # rows can never leak into valid rows (they are zeroed by the row mask).
        m = jnp.max(x, axis=1, keepdims=True)
        shifted = x - m
        lse = jnp.log(jnp.sum(jnp.exp(shifted), axis=1, keepdims=True))
        col = jax.lax.broadcasted_iota(jnp.int32, x.shape, 1)
        sel = jnp.sum(jnp.where(col == tgt, shifted, 0.0), axis=1, keepdims=True)
        logpt = sel - lse                        # log p_target  (<= 0)
        pt = jnp.exp(logpt)
        if gamma == 2.0:
            w = jnp.square(1.0 - pt)             # VPU square, not EUP pow
        elif float(gamma).is_integer():
            w = (1.0 - pt) ** int(gamma)         # integer pow -> mul chain
        else:
            # General fractional gamma: explicit exp/log (no silent truncation).
            base = jnp.maximum(1.0 - pt, jnp.finfo(jnp.float32).tiny)
            w = jnp.exp(jnp.float32(gamma) * jnp.log(base))
        return -w * logpt                        # (inner_rows, 1)

    def body(i, tot):
        r0 = pl.multiple_of(i * inner_rows, inner_rows)
        x = x_ref[pl.ds(r0, inner_rows), :].astype(jnp.float32)
        tgt = t_ref[pl.ds(r0, inner_rows), :]
        loss = per_row_loss(x, tgt)

        if needs_mask:
            row0 = lin * tile_n + r0             # first global row of this chunk

            def _masked():
                rows = row0 + jax.lax.broadcasted_iota(jnp.int32, loss.shape, 0)
                return jnp.sum(jnp.where(rows < n_total, loss, 0.0))

            def _plain():
                return jnp.sum(loss)

            # Only the ragged last chunk / clamped duplicate tiles pay for the
            # per-row iota + compare + select.
            s = jax.lax.cond(row0 + inner_rows > n_total, _masked, _plain)
        else:
            s = jnp.sum(loss)
        return tot + s

    tile_sum = jax.lax.fori_loop(0, n_inner, body, jnp.float32(0.0))

    # Scalar broadcast into the (8,128) accumulator: every element holds the
    # same running partial sum.  The wrapper reads out[::8, 0] per chunk and
    # relies on this invariant.
    acc_ref[...] += tile_sum

    @pl.when(ti == pl.num_programs(1) - 1)
    def _():
        out_ref[...] = acc_ref[...]              # one lane-dense write per chunk


def focal_loss2(logits, target, gamma=2, tile_n=None, num_chunks=None,
                buffer_count=None, use_core_parallel=False):
    """Mean focal loss.  logits: (N, C) float; target: (N,) int -> scalar."""
    n, c = logits.shape
    cfg = _tpu_config()
    num_buffers = 2 if buffer_count is None else int(buffer_count)
    tile_n, inner_rows = _pick_tiling(n, c, logits.dtype, cfg["input_budget"],
                                      num_buffers, tile_n)
    total_tiles = pl.cdiv(n, tile_n)
    if num_chunks is None:
        # Only split rows across chunks on multi-TensorCore chips (v7x, v4/v5p);
        # on single-TC v5e/v6e a second chunk is pure overhead.
        num_chunks = cfg["cores"] if total_tiles >= cfg["cores"] else 1
    num_chunks = max(1, min(int(num_chunks), total_tiles))
    tiles_per_chunk = pl.cdiv(total_tiles, num_chunks)

    needs_mask = (n % tile_n != 0) or (num_chunks * tiles_per_chunk != total_tiles)

    target2d = target.reshape(n, 1).astype(jnp.int32)

    def _in_map(ci, ti):
        lin = ci * tiles_per_chunk + ti
        # Clamp so a chunk with fewer real tiles re-reads the last tile; the
        # in-kernel row mask zeroes its contribution.
        return (jnp.minimum(lin, total_tiles - 1), 0)

    def _spec(shape):
        if buffer_count is None:
            return pl.BlockSpec(shape, _in_map)
        # Optional deeper pipelining (v5e/v6e) if per-step DMA is still exposed;
        # the VMEM budget above already divides by num_buffers.
        return pl.BlockSpec(shape, _in_map, pipeline_mode=pl.Buffered(num_buffers))

    kernel = functools.partial(
        _focal_loss_kernel, gamma=float(gamma), n_total=n, tile_n=tile_n,
        inner_rows=inner_rows, tiles_per_chunk=tiles_per_chunk,
        needs_mask=needs_mask)

    if use_core_parallel and num_chunks > 1:
        # On v7x: flip this on if profiling shows plain "parallel" does not
        # actually shard the chunk axis across the two TensorCores.
        dims = (pltpu.CORE_PARALLEL, pltpu.ARBITRARY)
    else:
        dims = ("parallel", "arbitrary")

    out = pl.pallas_call(
        kernel,
        out_shape=jax.ShapeDtypeStruct((num_chunks * 8, 128), jnp.float32),
        grid_spec=pltpu.PrefetchScalarGridSpec(
            num_scalar_prefetch=0,
            grid=(num_chunks, tiles_per_chunk),
            in_specs=[
                _spec((tile_n, c)),    # logits tile, streamed in input dtype
                _spec((tile_n, 1)),    # target tile (counted in the VMEM budget)
            ],
            out_specs=pl.BlockSpec((8, 128), lambda ci, ti: (ci, 0)),
            scratch_shapes=[pltpu.VMEM((8, 128), jnp.float32)],
        ),
        compiler_params=pltpu.CompilerParams(
            dimension_semantics=dims,
            vmem_limit_bytes=cfg["vmem_limit"],
        ),
    )(logits, target2d)

    # One replicated partial-sum scalar per chunk (see accumulator comment).
    partial_sums = out[::8, 0]
    return jnp.sum(partial_sums) / jnp.float32(n)


def _ref_focal_loss2(logits, target, gamma=2):
    logp = jax.nn.log_softmax(logits.astype(jnp.float32), axis=1)
    logpt = jnp.take_along_axis(logp, target.reshape(-1, 1), axis=1).reshape(-1)
    loss = -((1.0 - jnp.exp(logpt)) ** gamma) * logpt
    return jnp.mean(loss)


if __name__ == "__main__":
    key = jax.random.PRNGKey(0)
    k1, k2 = jax.random.split(key)

    N, C = 20, 32  # small shapes: batch=20, num_classes=32
    logits = jax.random.normal(k1, (N, C), dtype=jnp.float32)
    target = jax.random.randint(k2, (N,), 0, C, dtype=jnp.int32)

    ref = _ref_focal_loss2(logits, target, gamma=2)

    # Explicit tiny tile + forced 2-chunk split: exercises the multi-tile grid,
    # the ragged last tile and the clamped duplicate-tile path on any device.
    out = jax.block_until_ready(
        focal_loss2(logits, target, gamma=2, tile_n=8, num_chunks=2))
    assert jnp.allclose(out, ref, atol=1e-5, rtol=1e-5), (out, ref)

    # Default (auto, device-dependent budget) tiling path.
    out2 = jax.block_until_ready(focal_loss2(logits, target, gamma=2))
    assert jnp.allclose(out2, ref, atol=1e-5, rtol=1e-5), (out2, ref)

    # bf16 logits stream at bf16 HBM bandwidth (upcast happens in-kernel).
    logits_bf16 = logits.astype(jnp.bfloat16)
    ref_bf16 = _ref_focal_loss2(logits_bf16.astype(jnp.float32), target, gamma=2)
    out3 = jax.block_until_ready(focal_loss2(logits_bf16, target, gamma=2))
    assert jnp.allclose(out3, ref_bf16, atol=1e-4, rtol=1e-4), (out3, ref_bf16)

    # Non-integer gamma takes the general pow path (no silent truncation).
    ref_g = _ref_focal_loss2(logits, target, gamma=0.5)
    out4 = jax.block_until_ready(focal_loss2(logits, target, gamma=0.5))
    assert jnp.allclose(out4, ref_g, atol=1e-5, rtol=1e-5), (out4, ref_g)

    print("KERNEL_OK")
</pallas_src>

<mosaic_0001>
module attributes {stable_mosaic.version = 11 : i64} {
  func.func @_focal_loss_kernel(%arg0: i32, %arg1: i32, %arg2: memref<8x32xf32, #tpu.memory_space<vmem>>, %arg3: memref<8x1xi32, #tpu.memory_space<vmem>>, %arg4: memref<8x128xf32, #tpu.memory_space<vmem>>, %arg5: memref<8x128xf32, #tpu.memory_space<vmem>>) attributes {dimension_semantics = [#tpu.dimension_semantics<parallel>, #tpu.dimension_semantics<arbitrary>], iteration_bounds = array<i64: 2, 2>, scalar_prefetch = 0 : i64, scratch_operands = 1 : i64, tpu.core_type = #tpu.core_type<tc>, window_params = [{transform_indices = @transform_0, window_bounds = array<i64: 8, 32>}, {transform_indices = @transform_1, window_bounds = array<i64: 8, 1>}, {transform_indices = @transform_2, window_bounds = array<i64: 8, 128>}]} {
    %c0_i32 = arith.constant 0 : i32
    %0 = arith.cmpi eq, %arg1, %c0_i32 : i32
    %1 = arith.extui %0 : i1 to i32
    %c0_i32_0 = arith.constant 0 : i32
    %2 = arith.cmpi ne, %1, %c0_i32_0 : i32
    scf.if %2 {
      %cst_18 = arith.constant 0.000000e+00 : f32
      %49 = vector.broadcast %cst_18 : f32 to vector<8x128xf32>
      %c0_19 = arith.constant 0 : index
      %c0_20 = arith.constant 0 : index
      %50 = vector.load %arg5[%c0_19, %c0_20] : memref<8x128xf32, #tpu.memory_space<vmem>>, vector<8x128xf32>
      tpu.vector_store %arg5[%c0_19, %c0_20], %49 {strides = array<i32>} : memref<8x128xf32, #tpu.memory_space<vmem>>, vector<8x128xf32>,
    } else {
    }
    %c2_i32 = arith.constant 2 : i32
    %3 = arith.muli %arg0, %c2_i32 : i32
    %4 = arith.addi %3, %arg1 : i32
    %cst = arith.constant 0.000000e+00 : f32
    %c0_i32_1 = arith.constant 0 : i32
    %c8_i32 = arith.constant 8 : i32
    %5 = arith.muli %c0_i32_1, %c8_i32 : i32
    %6 = tpu.assume_multiple %5, 8 : i32
    %7 = arith.index_cast %6 : i32 to index
    %c0 = arith.constant 0 : index
    %8 = vector.load %arg2[%7, %c0] : memref<8x32xf32, #tpu.memory_space<vmem>>, vector<8x32xf32>
    %9 = arith.index_cast %6 : i32 to index
    %c0_2 = arith.constant 0 : index
    %10 = vector.load %arg3[%9, %c0_2] : memref<8x1xi32, #tpu.memory_space<vmem>>, vector<8x1xi32>
    %cst_3 = arith.constant dense<0xFF800000> : vector<8xf32>
    %11 = vector.multi_reduction <maximumf>, %8, %cst_3 [1] : vector<8x32xf32> to vector<8xf32>
    %12 = vector.shape_cast %11 : vector<8xf32> to vector<8x1xf32>
    %13 = vector.broadcast %12 : vector<8x1xf32> to vector<8x32xf32>
    %14 = arith.subf %8, %13 : vector<8x32xf32>
    %15 = math.exp %14 : vector<8x32xf32>
    %cst_4 = arith.constant dense<0.000000e+00> : vector<8xf32>
    %16 = vector.multi_reduction <add>, %15, %cst_4 [1] : vector<8x32xf32> to vector<8xf32>
    %17 = vector.shape_cast %16 : vector<8xf32> to vector<8x1xf32>
    %18 = math.log %17 : vector<8x1xf32>
    %19 = tpu.iota {dimensions = array<i32: 1>} : vector<8x32xi32>
    %20 = vector.broadcast %10 : vector<8x1xi32> to vector<8x32xi32>
    %21 = arith.cmpi eq, %19, %20 : vector<8x32xi32>
    %cst_5 = arith.constant 0.000000e+00 : f32
    %22 = vector.broadcast %cst_5 : f32 to vector<8x32xf32>
    %23 = arith.select %21, %14, %22 : vector<8x32xi1>, vector<8x32xf32>
    %cst_6 = arith.constant dense<0.000000e+00> : vector<8xf32>
    %24 = vector.multi_reduction <add>, %23, %cst_6 [1] : vector<8x32xf32> to vector<8xf32>
    %25 = vector.shape_cast %24 : vector<8xf32> to vector<8x1xf32>
    %26 = arith.subf %25, %18 : vector<8x1xf32>
    %27 = math.exp %26 : vector<8x1xf32>
    %cst_7 = arith.constant 1.000000e+00 : f32
    %28 = vector.broadcast %cst_7 : f32 to vector<8x1xf32>
    %29 = arith.subf %28, %27 : vector<8x1xf32>
    %30 = arith.mulf %29, %29 : vector<8x1xf32>
    %cst_8 = arith.constant 0.000000e+00 : f32
    %31 = vector.broadcast %cst_8 : f32 to vector<8x1xf32>
    %32 = arith.subf %31, %30 : vector<8x1xf32>
    %33 = arith.mulf %32, %26 : vector<8x1xf32>
    %c8_i32_9 = arith.constant 8 : i32
    %34 = arith.muli %4, %c8_i32_9 : i32
    %35 = arith.addi %34, %6 : i32
    %c8_i32_10 = arith.constant 8 : i32
    %36 = arith.addi %35, %c8_i32_10 : i32
    %c20_i32 = arith.constant 20 : i32
    %37 = arith.cmpi sgt, %36, %c20_i32 : i32
    %38 = arith.extui %37 : i1 to i32
    %c0_i32_11 = arith.constant 0 : i32
    %39 = arith.cmpi ne, %38, %c0_i32_11 : i32
    %40 = scf.if %39 -> (f32) {
      %49 = tpu.iota {dimensions = array<i32: 0>} : vector<8x1xi32>
      %50 = vector.broadcast %35 : i32 to vector<8x1xi32>
      %51 = arith.addi %50, %49 : vector<8x1xi32>
      %c20_i32_18 = arith.constant 20 : i32
      %52 = vector.broadcast %c20_i32_18 : i32 to vector<8x1xi32>
      %53 = arith.cmpi slt, %51, %52 : vector<8x1xi32>
      %cst_19 = arith.constant 0.000000e+00 : f32
      %54 = vector.broadcast %cst_19 : f32 to vector<8x1xf32>
      %55 = arith.select %53, %33, %54 : vector<8x1xi1>, vector<8x1xf32>
      %56 = vector.shape_cast %55 : vector<8x1xf32> to vector<1x8x1xf32>
      %cst_20 = arith.constant dense<0.000000e+00> : vector<1xf32>
      %57 = vector.multi_reduction <add>, %56, %cst_20 [1, 2] : vector<1x8x1xf32> to vector<1xf32>
      %58 = vector.shape_cast %57 : vector<1xf32> to vector<1x1x1xf32>
      %59 = vector.extract %58[0, 0, 0] : f32 from vector<1x1x1xf32>
      scf.yield %59 : f32
    } else {
      %49 = vector.shape_cast %33 : vector<8x1xf32> to vector<1x8x1xf32>
      %cst_18 = arith.constant dense<0.000000e+00> : vector<1xf32>
      %50 = vector.multi_reduction <add>, %49, %cst_18 [1, 2] : vector<1x8x1xf32> to vector<1xf32>
      %51 = vector.shape_cast %50 : vector<1xf32> to vector<1x1x1xf32>
      %52 = vector.extract %51[0, 0, 0] : f32 from vector<1x1x1xf32>
      scf.yield %52 : f32
    }
    %41 = arith.addf %cst, %40 : f32
    %c1_i32 = arith.constant 1 : i32
    %c0_12 = arith.constant 0 : index
    %c0_13 = arith.constant 0 : index
    %42 = vector.load %arg5[%c0_12, %c0_13] : memref<8x128xf32, #tpu.memory_space<vmem>>, vector<8x128xf32>
    %43 = vector.broadcast %41 : f32 to vector<8x128xf32>
    %44 = arith.addf %42, %43 : vector<8x128xf32>
    %c0_14 = arith.constant 0 : index
    %c0_15 = arith.constant 0 : index
    %45 = vector.load %arg5[%c0_14, %c0_15] : memref<8x128xf32, #tpu.memory_space<vmem>>, vector<8x128xf32>
    tpu.vector_store %arg5[%c0_14, %c0_15], %44 {strides = array<i32>} : memref<8x128xf32, #tpu.memory_space<vmem>>, vector<8x128xf32>,
    %c1_i32_16 = arith.constant 1 : i32
    %46 = arith.cmpi eq, %arg1, %c1_i32_16 : i32
    %47 = arith.extui %46 : i1 to i32
    %c0_i32_17 = arith.constant 0 : i32
    %48 = arith.cmpi ne, %47, %c0_i32_17 : i32
    scf.if %48 {
      %c0_18 = arith.constant 0 : index
      %c0_19 = arith.constant 0 : index
      %49 = vector.load %arg5[%c0_18, %c0_19] : memref<8x128xf32, #tpu.memory_space<vmem>>, vector<8x128xf32>
      %c0_20 = arith.constant 0 : index
      %c0_21 = arith.constant 0 : index
      %50 = vector.load %arg4[%c0_20, %c0_21] : memref<8x128xf32, #tpu.memory_space<vmem>>, vector<8x128xf32>
      tpu.vector_store %arg4[%c0_20, %c0_21], %49 {strides = array<i32>} : memref<8x128xf32, #tpu.memory_space<vmem>>, vector<8x128xf32>,
    } else {
    }
    return
  }
  func.func @transform_0(%arg0: i32, %arg1: i32) -> (i32, i32) {
    %c2_i32 = arith.constant 2 : i32
    %0 = arith.muli %arg0, %c2_i32 : i32
    %1 = arith.addi %0, %arg1 : i32
    %c2_i32_0 = arith.constant 2 : i32
    %2 = arith.minsi %1, %c2_i32_0 : i32
    %c0_i32 = arith.constant 0 : i32
    %c0_i32_1 = arith.constant 0 : i32
    return %2, %c0_i32 : i32, i32
  }
  func.func @transform_1(%arg0: i32, %arg1: i32) -> (i32, i32) {
    %c2_i32 = arith.constant 2 : i32
    %0 = arith.muli %arg0, %c2_i32 : i32
    %1 = arith.addi %0, %arg1 : i32
    %c2_i32_0 = arith.constant 2 : i32
    %2 = arith.minsi %1, %c2_i32_0 : i32
    %c0_i32 = arith.constant 0 : i32
    %c0_i32_1 = arith.constant 0 : i32
    return %2, %c0_i32 : i32, i32
  }
  func.func @transform_2(%arg0: i32, %arg1: i32) -> (i32, i32) {
    %c0_i32 = arith.constant 0 : i32
    %c0_i32_0 = arith.constant 0 : i32
    return %arg0, %c0_i32 : i32, i32
  }
}

</mosaic_0001>

<llo_original>
// kernel: tpu_custom_call.1
$region0: #{tpu_custom_call.1}
  #allocation0 [shape = 'u32[]', space=smem, size = 0x4, offset = 0x4, fixed_abs, tag = 'smem constant byte address 0x4 - core index']
  #allocation1 [shape = 'u32[72,128]{1,0:T(1,128)}', space=vmem, size = 0x9000, scoped, tag = 'internal scratch']
  #allocation2 [shape = 'f32[8,128]{1,0:T(8,128)}', space=vmem, size = 0x1000, scoped, tag = 'scratch operand']
  %s0 = inlined_call_operand.vmem [shape: f32[20,32], index: 0, kind: input, shape index: {}]
  %s1 = inlined_call_operand.vmem [shape: s32[20,1], index: 1, kind: input, shape index: {}]
  %s2 = inlined_call_operand.hbm [shape: f32[16,128], index: 2, kind: output, shape index: {}]
  %s3 = sld [smem:[#allocation0]]
  $region57: #{tpu_custom_call.1} parent=0
    _
  %s5 = ssub.s32 1, %s3
  %s6 = scalar_select 0, %s5, %s3
  $region1: #{tpu_custom_call.1} parent=0
    #allocation3 [shape = 'u8[8192]{0}', space=vmem, size = 0x2000, scoped, tag = 'output window, operand 0']
    #allocation4 [shape = 's32[2]{0}', space=sflag, size = 0x8, scoped, tag = 'scoped memory for tpu_custom_call.1']
    %7 = vsyncpa [#allocation4], 0
    %s8 = scalar_lea.sflag [#allocation4], 1
    %9 = vsyncpa %s8, 0
    loop: start=0, step=1, limit=6
    $region2: #{tpu_custom_call.1} parent=1 // loop_pre_header
      _
    $region3: #{tpu_custom_call.1} parent=1 // loop_header
      %s11 = sphi 0, %s15
      %p12 = scmp.ge.s32.totalorder %s11, 6
      %s18 = sphi 0, %s30
      %s19 = sphi 0, %s26
      %s20 = sphi 0, %s18
      %s21 = sphi 0, %s19
      %s22 = sphi 0, %s20
      %s23 = sphi 0, %s21
      %s41 = sphi 0, %s43
      %s44 = sphi 0, %s41
      %s45 = sphi 0, %s44
      %s61 = sphi 0, %s45
      %s75 = sphi 0, %s77
      %s78 = sphi 0, %s75
      %s79 = sphi 0, %s78
      %s95 = sphi 0, %s79
      %s101 = sphi 0, %s103
      %s104 = sphi 0, %s101
      %s105 = sphi 0, %s104
      %s121 = sphi 0, %s105
    $region4: #{tpu_custom_call.1} parent=1 // loop_header_branch
      %14 = sbr.rel (%p12) target = $region8
    $region5: #{tpu_custom_call.1} parent=1 // loop_body
      %s16 = ssub.s32 %s11, 1
      %s17 = ssub.s32 %s11, 2
      %s24 = sadd.s32 1, %s19
      %p25 = scmp.ge.s32.totalorder %s24, 2
      %s26 = scalar_select %p25, 0, %s24
      %s27 = sadd.s32 1, %s18
      %s28 = scalar_select %p25, %s27, %s18
      %p29 = scmp.ge.s32.totalorder %s28, 2
      %s30 = scalar_select %p29, 0, %s28
      %s31 = smul.u32 %s18, 2
      %s32 = sadd.s32 %s31, %s19
      %p33 = scmp.lt.s32.totalorder %s32, 2
      %s34 = scalar_select %p33, %s32, 2
      %s35 = smul.u32 %s30, 2
      %s36 = sadd.s32 %s35, %s26
      %p37 = scmp.lt.s32.totalorder %s36, 2
      %s38 = scalar_select %p37, %s36, 2
      %s39 = ssub.s32 %s34, %s38
      %p40 = scmp.eq.s32.totalorder %s39, 0
      %s42 = sadd.s32 %s41, 1
      %s43 = scalar_select %p40, %s41, %s42
      %p46 = pneg %p40
      %p47 = scmp.eq.s32.totalorder %s11, 3
      %p48 = por %p46, %p47
      %p49 = scmp.ne.s32.totalorder %s41, %s44
      %p50 = scmp.eq.s32.totalorder %s11, 0
      %p51 = por %p49, %p50
      %p52 = scmp.ne.s32.totalorder %s41, %s44
      %p53 = scmp.eq.s32.totalorder %s16, 3
      %p54 = por %p52, %p53
      %p55 = scmp.ne.s32.totalorder %s44, %s45
      %p56 = scmp.eq.s32.totalorder %s16, 0
      %p57 = por %p55, %p56
      %p58 = scmp.ne.s32.totalorder %s44, %s45
      %p59 = scmp.eq.s32.totalorder %s17, 3
      %p60 = por %p58, %p59
      %p62 = scmp.ne.s32.totalorder %s45, %s61
      %p63 = scmp.eq.s32.totalorder %s17, 0
      %p64 = por %p62, %p63
      %s65 = smul.u32 %s18, 2
      %s66 = sadd.s32 %s65, %s19
      %p67 = scmp.lt.s32.totalorder %s66, 2
      %s68 = scalar_select %p67, %s66, 2
      %s69 = smul.u32 %s30, 2
      %s70 = sadd.s32 %s69, %s26
      %p71 = scmp.lt.s32.totalorder %s70, 2
      %s72 = scalar_select %p71, %s70, 2
      %s73 = ssub.s32 %s68, %s72
      %p74 = scmp.eq.s32.totalorder %s73, 0
      %s76 = sadd.s32 %s75, 1
      %s77 = scalar_select %p74, %s75, %s76
      %p80 = pneg %p74
      %p81 = scmp.eq.s32.totalorder %s11, 3
      %p82 = por %p80, %p81
      %p83 = scmp.ne.s32.totalorder %s75, %s78
      %p84 = scmp.eq.s32.totalorder %s11, 0
      %p85 = por %p83, %p84
      %p86 = scmp.ne.s32.totalorder %s75, %s78
      %p87 = scmp.eq.s32.totalorder %s16, 3
      %p88 = por %p86, %p87
      %p89 = scmp.ne.s32.totalorder %s78, %s79
      %p90 = scmp.eq.s32.totalorder %s16, 0
      %p91 = por %p89, %p90
      %p92 = scmp.ne.s32.totalorder %s78, %s79
      %p93 = scmp.eq.s32.totalorder %s17, 3
      %p94 = por %p92, %p93
      %p96 = scmp.ne.s32.totalorder %s79, %s95
      %p97 = scmp.eq.s32.totalorder %s17, 0
      %p98 = por %p96, %p97
      %s99 = ssub.s32 %s18, %s30
      %p100 = scmp.eq.s32.totalorder %s99, 0
      %s102 = sadd.s32 %s101, 1
      %s103 = scalar_select %p100, %s101, %s102
      %p106 = pneg %p100
      %p107 = scmp.eq.s32.totalorder %s11, 3
      %p108 = por %p106, %p107
      %p109 = scmp.ne.s32.totalorder %s101, %s104
      %p110 = scmp.eq.s32.totalorder %s11, 0
      %p111 = por %p109, %p110
      %p112 = scmp.ne.s32.totalorder %s101, %s104
      %p113 = scmp.eq.s32.totalorder %s16, 3
      %p114 = por %p112, %p113
      %p115 = scmp.ne.s32.totalorder %s104, %s105
      %p116 = scmp.eq.s32.totalorder %s16, 0
      %p117 = por %p115, %p116
      %p118 = scmp.ne.s32.totalorder %s104, %s105
      %p119 = scmp.eq.s32.totalorder %s17, 3
      %p120 = por %p118, %p119
      %p122 = scmp.ne.s32.totalorder %s105, %s121
      %p123 = scmp.eq.s32.totalorder %s17, 0
      %p124 = por %p122, %p123
      %p125 = scmp.le.s32.totalorder 1, %s11
      %p126 = scmp.lt.s32.totalorder %s11, 5
      %p127 = pnand %p125, %p126
      %p128 = pneg %p127
      // Predicated region
      $region9: #{tpu_custom_call.1} parent=5 // pred_check
        _
      $region10: #{tpu_custom_call.1} parent=5 // pred_check_branch
        %130 = sbr.rel (%p127) target = $region12
      $region11: #{tpu_custom_call.1} parent=5 // pred_region
        %s131 = ssub.s32 %s11, 1
      $region12: #{tpu_custom_call.1} parent=5 // pred_fallthru
        _
      %p132 = scmp.lt.s32.totalorder %s11, 4
      // Predicated region
      $region13: #{tpu_custom_call.1} parent=5 // pred_check
        %p133 = pneg %p132
      $region14: #{tpu_custom_call.1} parent=5 // pred_check_branch
        %135 = sbr.rel (%p133) target = $region16
      $region15: #{tpu_custom_call.1} parent=5 // pred_region
        // Predicated region
        $region17: #{tpu_custom_call.1} parent=15 // pred_check
          %p136 = pneg %p51
        $region18: #{tpu_custom_call.1} parent=15 // pred_check_branch
          %138 = sbr.rel (%p136) target = $region20
        $region19: #{tpu_custom_call.1} parent=15 // pred_region
          %s139 = smul.u32 %s18, 2
          %s140 = sadd.s32 %s139, %s19
          %p141 = scmp.lt.s32.totalorder %s140, 2
          %s142 = scalar_select %p141, %s140, 2
          %p143 = scmp.lt.s32.totalorder %s142, 2
          %s144 = scalar_select %p143, %s142, 2
          %s145 = smul.addr %s144, 8
          %s146 = scalar_lea.vmem %s0, %s145
          %s147 = smul.u32 %s18, 2
          %s148 = sadd.s32 %s147, %s19
          %p149 = scmp.lt.s32.totalorder %s148, 2
          %s150 = scalar_select %p149, %s148, 2
        $region20: #{tpu_custom_call.1} parent=15 // pred_fallthru
          _
        // Predicated region
        $region21: #{tpu_custom_call.1} parent=15 // pred_check
          %p151 = pneg %p85
        $region22: #{tpu_custom_call.1} parent=15 // pred_check_branch
          %153 = sbr.rel (%p151) target = $region24
        $region23: #{tpu_custom_call.1} parent=15 // pred_region
          %s154 = smul.u32 %s18, 2
          %s155 = sadd.s32 %s154, %s19
          %p156 = scmp.lt.s32.totalorder %s155, 2
          %s157 = scalar_select %p156, %s155, 2
          %p158 = scmp.lt.s32.totalorder %s157, 2
          %s159 = scalar_select %p158, %s157, 2
          %s160 = smul.addr %s159, 8
          %s161 = scalar_lea.vmem %s1, %s160
          %s162 = smul.u32 %s18, 2
          %s163 = sadd.s32 %s162, %s19
          %p164 = scmp.lt.s32.totalorder %s163, 2
          %s165 = scalar_select %p164, %s163, 2
        $region24: #{tpu_custom_call.1} parent=15 // pred_fallthru
          _
      $region16: #{tpu_custom_call.1} parent=5 // pred_fallthru
        _
      %p166 = scmp.le.s32.totalorder 1, %s11
      %p167 = scmp.lt.s32.totalorder %s11, 5
      %p168 = pnand %p166, %p167
      %p169 = pneg %p168
      // Predicated region
      $region25: #{tpu_custom_call.1} parent=5 // pred_check
        _
      $region26: #{tpu_custom_call.1} parent=5 // pred_check_branch
        %171 = sbr.rel (%p168) target = $region28
      $region27: #{tpu_custom_call.1} parent=5 // pred_region
        %s172 = ssub.s32 %s11, 1
        %s173 = smul.u32 %s20, 2
        %s174 = sadd.s32 %s173, %s21
        %p175 = scmp.lt.s32.totalorder %s174, 2
        %s176 = scalar_select %p175, %s174, 2
        %p177 = scmp.lt.s32.totalorder %s176, 2
        %s178 = scalar_select %p177, %s176, 2
        %s179 = smul.addr %s178, 8
        %s180 = scalar_lea.vmem %s0, %s179
        %p181 = pneg %p57
        %p182 = pneg %p54
        %s183 = smul.u32 %s20, 2
        %s184 = sadd.s32 %s183, %s21
        %p185 = scmp.lt.s32.totalorder %s184, 2
        %s186 = scalar_select %p185, %s184, 2
        %p187 = scmp.lt.s32.totalorder %s186, 2
        %s188 = scalar_select %p187, %s186, 2
        %s189 = smul.addr %s188, 8
        %s190 = scalar_lea.vmem %s1, %s189
        %p191 = pneg %p91
        %p192 = pneg %p88
        %p193 = pneg %p117
        %p194 = pneg %p114
        %s195 = sand.u32 %s104, 1
        %s196 = scalar_lea.sflag [#allocation4], %s195
        %s197 = sand.u32 %s104, 1
        %s198 = smul.addr %s197, 8
        %s199 = scalar_lea.vmem [#allocation3], %s198
        %s200 = smul.u32 %s20, 2
        %s201 = sadd.s32 %s200, %s21
        %p202 = scmp.lt.s32.totalorder %s201, 2
        %s203 = scalar_select %p202, %s201, 2
        %p204 = scmp.lt.s32.totalorder %s203, 2
        %s205 = scalar_select %p204, %s203, 2
        %s206 = smul.addr %s205, 8
        %s207 = scalar_lea.vmem %s0, %s206
        %s208 = smul.u32 %s20, 2
        %s209 = sadd.s32 %s208, %s21
        %p210 = scmp.lt.s32.totalorder %s209, 2
        %s211 = scalar_select %p210, %s209, 2
        %s212 = smul.u32 %s20, 2
        %s213 = sadd.s32 %s212, %s21
        %p214 = scmp.lt.s32.totalorder %s213, 2
        %s215 = scalar_select %p214, %s213, 2
        %p216 = scmp.lt.s32.totalorder %s215, 2
        %s217 = scalar_select %p216, %s215, 2
        %s218 = smul.addr %s217, 8
        %s219 = scalar_lea.vmem %s1, %s218
        %s220 = smul.u32 %s20, 2
        %s221 = sadd.s32 %s220, %s21
        %p222 = scmp.lt.s32.totalorder %s221, 2
        %s223 = scalar_select %p222, %s221, 2
        %p224 = scmp.eq.s32.totalorder %s21, 0
        // Predicated region
        $region29: #{tpu_custom_call.1} parent=27 // pred_check
          %p225 = pneg %p224
        $region30: #{tpu_custom_call.1} parent=27 // pred_check_branch
          %227 = sbr.rel (%p225) target = $region32
        $region31: #{tpu_custom_call.1} parent=27 // pred_region
          %228 = vst [vmem:[#allocation2] sm:$0xff] 0.0
        $region32: #{tpu_custom_call.1} parent=27 // pred_fallthru
          _
        %s229 = smul.u32 %s20, 2
        %s230 = sadd.s32 %s229, %s21
        %v231 = vld [vmem:[%s207] sm:$0xff]
        %v232 = vld [vmem:[%s219] sm:$0xff]
        %vm233 = vcmask 261120
        %v234 = vsel %vm233, %v231, -inf
        %235 = vmax.xlane.f32.xlu0 %v234
        %v236 = vpop.xlane.xlu0 %235
        %v237 = vsub.f32 %v231, %v236
        %v238 = vmul.f32 %v237, 1.442695
        %v239 = vpow.pop %v238
        %v240 = vsel %vm233, %v239, 0.0
        %241 = vadd.xlane.f32.xlu0 %v240
        %v242 = vpop.xlane.xlu0 %241
        %v243 = vlog2.pop %v242
        %v244 = vmul.f32 %v243, 0.6931472
        %v245 = vlaneseq
        %v246 = vand.u32 %v245, 127
        %247 = vset.pattern.permute.xlu0 0
        %248 = vperm.xlu0 %247, %v232
        %v249 = vpop.permute.xlu0 %248
        %vm250 = vcmp.eq.s32.totalorder %v246, %v249
        %v251 = vsel %vm250, %v237, 0.0
        %v252 = vsel %vm233, %v251, 0.0
        %253 = vadd.xlane.f32.xlu0 %v252
        %v254 = vpop.xlane.xlu0 %253
        %v255 = vsub.f32 %v254, %v244
        %v256 = vmul.f32 %v255, 1.442695
        %v257 = vpow.pop %v256
        %v258 = vsub.f32 1.0, %v257
        %v259 = vmul.f32 %v258, %v258
        %v260 = vsub.f32 0.0, %v259
        %v261 = vmul.f32 %v260, %v255
        %s262 = smul.u32 %s230, 8
        %s263 = sadd.s32 %s262, 0
        %s264 = sadd.s32 %s263, 8
        %p265 = scmp.gt.s32.totalorder %s264, 20
        // Predicated region
        $region33: #{tpu_custom_call.1} parent=27 // pred_check
          %p266 = pneg %p265
        $region34: #{tpu_custom_call.1} parent=27 // pred_check_branch
          %268 = sbr.rel (%p266) target = $region36
        $region35: #{tpu_custom_call.1} parent=27 // pred_region
          %v269 = vlaneseq
          %v270 = vshrl.u32 %v269, 7
          %v271 = vstv %s263
          %v272 = vadd.s32 %v271, %v270
          %vm273 = vcmp.lt.s32.totalorder %v272, 20
          %v274 = vsel %vm273, %v261, 0.0
          %vm275 = vcmask 7168
          %v276 = vsel %vm275, %v274, 0.0
          %277 = vadd.xlane.f32.xlu0 %v276
          %v278 = vpop.xlane.xlu0 %277
          %v279 = vrot.slane %v278, 4
          %v280 = vadd.f32 %v278, %v279
          %v281 = vrot.slane %v280, 2
          %v282 = vadd.f32 %v280, %v281
          %v283 = vrot.slane %v282, 1
          %v284 = vadd.f32 %v282, %v283
          %s285 = vtos %v284
        $region36: #{tpu_custom_call.1} parent=27 // pred_fallthru
          %s286 = sphi 0, %s285
        %p287 = pneg %p265
        // Predicated region
        $region37: #{tpu_custom_call.1} parent=27 // pred_check
          _
        $region38: #{tpu_custom_call.1} parent=27 // pred_check_branch
          %289 = sbr.rel (%p265) target = $region40
        $region39: #{tpu_custom_call.1} parent=27 // pred_region
          %vm290 = vcmask 7168
          %v291 = vsel %vm290, %v261, 0.0
          %292 = vadd.xlane.f32.xlu0 %v291
          %v293 = vpop.xlane.xlu0 %292
          %v294 = vrot.slane %v293, 4
          %v295 = vadd.f32 %v293, %v294
          %v296 = vrot.slane %v295, 2
          %v297 = vadd.f32 %v295, %v296
          %v298 = vrot.slane %v297, 1
          %v299 = vadd.f32 %v297, %v298
          %s300 = vtos %v299
        $region40: #{tpu_custom_call.1} parent=27 // pred_fallthru
          %s301 = sphi %s286, %s300
        %s302 = sadd.f32 %s301, 0.0
        %v303 = vld [vmem:[#allocation2] sm:$0xff]
        %v304 = vstv %s302
        %v305 = vadd.f32 %v303, %v304
        %306 = vst [vmem:[#allocation2] sm:$0xff] %v305
        %p307 = scmp.eq.s32.totalorder %s21, 1
        // Predicated region
        $region41: #{tpu_custom_call.1} parent=27 // pred_check
          %p308 = pneg %p307
        $region42: #{tpu_custom_call.1} parent=27 // pred_check_branch
          %310 = sbr.rel (%p308) target = $region44
        $region43: #{tpu_custom_call.1} parent=27 // pred_region
          %v311 = vld [vmem:[#allocation2] sm:$0xff]
          %312 = vst [vmem:[%s199] sm:$0xff] %v311
        $region44: #{tpu_custom_call.1} parent=27 // pred_fallthru
          _
        %s313 = sand.u32 %s104, 1
        %s314 = scalar_lea.sflag [#allocation4], %s313
        %s315 = sand.u32 %s104, 1
        %s316 = smul.addr %s315, 8
        %s317 = scalar_lea.vmem [#allocation3], %s316
        // Predicated region
        $region45: #{tpu_custom_call.1} parent=27 // pred_check
          %p318 = pneg %p114
        $region46: #{tpu_custom_call.1} parent=27 // pred_check_branch
          %320 = sbr.rel (%p318) target = $region48
        $region47: #{tpu_custom_call.1} parent=27 // pred_region
          %322 = vsyncadd %s314, 0
          %s323 = smul.addr %s20, 8
          %s324 = scalar_lea.hbm %s2, %s323
          %s326 = sshll.u32 %s317, 4
          %s327 = int_to_ptr.vmem [resolvable:$true] %s326
          %s328 = sshll.u32 %s324, 4
          %s329 = int_to_ptr.hbm [resolvable:$true] %s328
          %331 = dma.vmem_to_hbm [thread:$0]  %s327, 128, %s329, %s314
        $region48: #{tpu_custom_call.1} parent=27 // pred_fallthru
          _
      $region28: #{tpu_custom_call.1} parent=5 // pred_fallthru
        _
      %p332 = scmp.le.s32.totalorder 2, %s11
      // Predicated region
      $region49: #{tpu_custom_call.1} parent=5 // pred_check
        %p333 = pneg %p332
      $region50: #{tpu_custom_call.1} parent=5 // pred_check_branch
        %335 = sbr.rel (%p333) target = $region52
      $region51: #{tpu_custom_call.1} parent=5 // pred_region
        %s336 = ssub.s32 %s11, 2
        // Predicated region
        $region53: #{tpu_custom_call.1} parent=51 // pred_check
          %p337 = pneg %p120
        $region54: #{tpu_custom_call.1} parent=51 // pred_check_branch
          %339 = sbr.rel (%p337) target = $region56
        $region55: #{tpu_custom_call.1} parent=51 // pred_region
          %s340 = sand.u32 %s105, 1
          %s341 = scalar_lea.sflag [#allocation4], %s340
          %s342 = sand.u32 %s105, 1
          %s343 = smul.addr %s342, 8
          %s344 = scalar_lea.vmem [#allocation3], %s343
          %346 = dma.done %s341, 128
        $region56: #{tpu_custom_call.1} parent=51 // pred_fallthru
          _
      $region52: #{tpu_custom_call.1} parent=5 // pred_fallthru
        _
    $region6: #{tpu_custom_call.1} parent=1 // loop_footer
      %s15 = sadd.s32 1, %s11
    $region7: #{tpu_custom_call.1} parent=1 // loop_footer_branch
      %10 = sbr.rel target = $region3
    $region8: #{tpu_custom_call.1} parent=1 // loop_exit
      _
    %347 = vsyncpa [#allocation4], 1
    %s348 = scalar_lea.sflag [#allocation4], 1
    %349 = vsyncpa %s348, 1

</llo_original>
